<compile_context>
chip_gen: v7x
topology: tpu7x:2x2x1
jax: 0.10.0
libtpu: 0.0.40
codegen_flags: <defaults>
</compile_context>

<pallas_src>
import functools

import numpy as np
import jax
import jax.numpy as jnp
from jax.experimental import pallas as pl
from jax.experimental.pallas import tpu as pltpu


# ----------------------------------------------------------------------------- kernel
def rep_upsample_kernel(xcat_ref, xpad_ref, w_ref, b_ref, cw_ref, rw_ref, o_ref,
                        *, width):
    # xcat_ref: (4C, HW)          bf16  shifted deconv taps [x, x_r, x_d, x_dr],
    #                                   channel-major, lane index l = m*W + n.
    # xpad_ref: (C, HW + 2*(W+1)) f32   input plane, zero-padded by W+1 lanes per side.
    # w_ref   : (4C, 4C)          bf16  fused deconv weights: row block = output parity,
    #                                   column block = input tap.
    # b_ref   : (4C, 1)           f32   fused bias, replicated once per parity block.
    # cw_ref  : (4, HW)           f32   column-pass bilinear weights (prev0,cur0,cur1,next1)(n).
    # rw_ref  : (4, HW + 2)       f32   row-pass bilinear weights on a domain widened by
    #                                   one lane per side (so the column pass can slice
    #                                   left/right neighbours without wrap).
    # o_ref   : (2, 2, C, HW)     f32   relu(deconv + upsample) per output parity (a, b).
    c = xpad_ref.shape[0]
    hw = xcat_ref.shape[1]
    off = width + 1            # zero lanes added on each side of xpad
    ext = hw + 2               # row-pass domain: one extra lane on each side

    # Fused ConvTranspose2d (+ 1x1 branch, + BN): one MXU matmul -> all four parities.
    y = jnp.dot(w_ref[...], xcat_ref[...],
                preferred_element_type=jnp.float32)              # (4C, HW) f32

    # Bilinear x2 (align_corners=True): separable 2-tap passes on the VPU.
    xpad = xpad_ref[...]
    xs_u = xpad[:, off - 1 - width: off - 1 - width + ext]       # x[l - W]
    xs_c = xpad[:, off - 1: off - 1 + ext]                       # x[l]
    xs_d = xpad[:, off - 1 + width: off - 1 + width + ext]       # x[l + W]

    r0 = rw_ref[0:1, :] * xs_u + rw_ref[1:2, :] * xs_c           # output row parity a = 0
    r1 = rw_ref[2:3, :] * xs_c + rw_ref[3:4, :] * xs_d           # output row parity a = 1
    rows = (r0, r1)

    cp0, cc0 = cw_ref[0:1, :], cw_ref[1:2, :]
    cc1, cn1 = cw_ref[2:3, :], cw_ref[3:4, :]

    for p, (a, b) in enumerate(((0, 0), (0, 1), (1, 0), (1, 1))):
        if b == 0:
            up = cp0 * rows[a][:, 0:hw] + cc0 * rows[a][:, 1:hw + 1]
        else:
            up = cc1 * rows[a][:, 1:hw + 1] + cn1 * rows[a][:, 2:hw + 2]
        dec = y[p * c:(p + 1) * c, :] + b_ref[p * c:(p + 1) * c, :]
        o_ref[a, b, :, :] = jnp.maximum(dec + up, 0.0)


# ----------------------------------------------------------------------------- wrapper
def rep_upsample(x_nchw, w_all, b_all, cw, rw):
    n, c, h, w = x_nchw.shape
    hw = h * w
    off = w + 1

    # Pre-pack the four shifted deconv taps (channel-major; avoids in-kernel relayouts).
    xp = jnp.pad(x_nchw, ((0, 0), (0, 0), (0, 1), (0, 1)))       # zero pad bottom/right
    taps = jnp.concatenate(
        [xp[:, :, :h, :w],      # x[m, n]
         xp[:, :, :h, 1:],      # x[m, n+1]
         xp[:, :, 1:, :w],      # x[m+1, n]
         xp[:, :, 1:, 1:]],     # x[m+1, n+1]
        axis=1)
    xcat = taps.reshape(n, 4 * c, hw).astype(jnp.bfloat16)
    xpad = jnp.pad(x_nchw.reshape(n, c, hw), ((0, 0), (0, 0), (off, off)))

    flops = n * (2 * (4 * c) * (4 * c) * hw + 30 * c * hw)
    bytes_accessed = (xcat.size * 2 + xpad.size * 4 + w_all.size * 2 + b_all.size * 4
                      + cw.size * 4 + rw.size * 4 + n * 4 * c * hw * 4)

    kout = pl.pallas_call(
        functools.partial(rep_upsample_kernel, width=w),
        out_shape=jax.ShapeDtypeStruct((n, 2, 2, c, hw), jnp.float32),
        grid=(n,),
        in_specs=[
            pl.BlockSpec((None, 4 * c, hw), lambda i: (i, 0, 0)),
            pl.BlockSpec((None, c, hw + 2 * off), lambda i: (i, 0, 0)),
            pl.BlockSpec((4 * c, 4 * c), lambda i: (0, 0)),
            pl.BlockSpec((4 * c, 1), lambda i: (0, 0)),
            pl.BlockSpec((4, hw), lambda i: (0, 0)),
            pl.BlockSpec((4, hw + 2), lambda i: (0, 0)),
        ],
        out_specs=pl.BlockSpec((None, 2, 2, c, hw), lambda i: (i, 0, 0, 0, 0)),
        compiler_params=pltpu.CompilerParams(dimension_semantics=("parallel",)),
        cost_estimate=pl.CostEstimate(flops=flops, transcendentals=0,
                                      bytes_accessed=bytes_accessed),
    )(xcat, xpad, w_all, b_all, cw, rw)

    # Parity interleave back to NCHW (single XLA transpose; NCHW is the module contract).
    out = kout.reshape(n, 2, 2, c, h, w)
    return jnp.transpose(out, (0, 3, 4, 1, 5, 2)).reshape(n, c, 2 * h, 2 * w)


# --------------------------------------------------------------------- parameter fusion
def make_params(c, key):
    ks = jax.random.split(key, 10)
    return dict(
        w3=jax.random.normal(ks[0], (c, c, 3, 3), jnp.float32) * 0.2,
        w1=jax.random.normal(ks[1], (c, c, 1, 1), jnp.float32) * 0.2,
        g3=jax.random.uniform(ks[2], (c,), jnp.float32, 0.5, 1.5),
        be3=jax.random.normal(ks[3], (c,), jnp.float32) * 0.1,
        mu3=jax.random.normal(ks[4], (c,), jnp.float32) * 0.1,
        v3=jax.random.uniform(ks[5], (c,), jnp.float32, 0.5, 1.5),
        g1=jax.random.uniform(ks[6], (c,), jnp.float32, 0.5, 1.5),
        be1=jax.random.normal(ks[7], (c,), jnp.float32) * 0.1,
        mu1=jax.random.normal(ks[8], (c,), jnp.float32) * 0.1,
        v1=jax.random.uniform(ks[9], (c,), jnp.float32, 0.5, 1.5),
    )


def fuse_params(p, eps=1e-5):
    """Same math as RepUpsample.switch_to_deploy: fold BN into the deconv weights and
    merge the (zero-padded) 1x1 branch into the center tap of the 3x3 branch."""
    std3 = jnp.sqrt(p["v3"] + eps)
    std1 = jnp.sqrt(p["v1"] + eps)
    k3 = p["w3"] * (p["g3"] / std3).reshape(1, -1, 1, 1)     # (Cin, Cout, 3, 3)
    k1 = p["w1"] * (p["g1"] / std1).reshape(1, -1, 1, 1)     # (Cin, Cout, 1, 1)
    b3 = p["be3"] - p["mu3"] * p["g3"] / std3
    b1 = p["be1"] - p["mu1"] * p["g1"] / std1
    kf = k3.at[:, :, 1, 1].add(k1[:, :, 0, 0])               # (Cin, Cout, 3, 3)
    bias = b3 + b1                                           # (C,)
    return kf, bias


def build_deconv_operator(kf, bias):
    """Stack the per-parity polyphase taps into a single (4C, 4C) weight so one matmul
    against [x, x_r, x_d, x_dr] (channel-major) yields all four output parities."""
    c = kf.shape[0]
    tt = lambda kh, kw: kf[:, :, kh, kw].T                   # (Cout, Cin)
    z = jnp.zeros((c, c), kf.dtype)
    rows = [
        jnp.concatenate([tt(1, 1), z,        z,        z       ], axis=1),  # parity (0,0)
        jnp.concatenate([tt(1, 2), tt(1, 0), z,        z       ], axis=1),  # parity (0,1)
        jnp.concatenate([tt(2, 1), z,        tt(0, 1), z       ], axis=1),  # parity (1,0)
        jnp.concatenate([tt(2, 2), tt(2, 0), tt(0, 2), tt(0, 0)], axis=1),  # parity (1,1)
    ]
    w_all = jnp.concatenate(rows, axis=0).astype(jnp.bfloat16)              # (4C, 4C)
    b_all = jnp.tile(bias, 4).reshape(4 * c, 1)                             # (4C, 1) f32
    return w_all, b_all


# --------------------------------------------------------------- bilinear (align_corners)
def _interp_matrix(l_in, l_out):
    """Interpolation matrix for 1-D bilinear upsample with align_corners=True."""
    o = np.arange(l_out)
    src = o * (l_in - 1) / (l_out - 1) if l_out > 1 else np.zeros(l_out)
    i0 = np.clip(np.floor(src).astype(np.int64), 0, l_in - 1)
    i1 = np.minimum(i0 + 1, l_in - 1)
    frac = (src - i0).astype(np.float32)
    a = np.zeros((l_out, l_in), np.float32)
    a[o, i0] += (1.0 - frac)
    a[o, i1] += frac
    return a


def _parity_tap_weights(l):
    """Per-output-parity 2-tap decomposition of the x2 align_corners matrix:
    parity 0 output m mixes inputs (m-1, m); parity 1 mixes (m, m+1)."""
    a = _interp_matrix(l, 2 * l)
    i = np.arange(l)
    prev0 = np.where(i > 0, a[2 * i, np.maximum(i - 1, 0)], 0.0)
    cur0 = a[2 * i, i]
    cur1 = a[2 * i + 1, i]
    next1 = np.where(i < l - 1, a[2 * i + 1, np.minimum(i + 1, l - 1)], 0.0)
    return np.stack([prev0, cur0, cur1, next1], 0).astype(np.float32)       # (4, L)


def build_upsample_weights(h, w):
    cw = _parity_tap_weights(w)                                # (4, W) column weights f(n)
    rw = _parity_tap_weights(h)                                # (4, H) row weights    f(m)
    col = np.tile(cw, (1, h))                                  # (4, H*W), lane l = m*W + n
    row = np.pad(np.repeat(rw, w, axis=1), ((0, 0), (1, 1)))   # (4, H*W + 2)
    return jnp.asarray(col), jnp.asarray(row)


# ----------------------------------------------------------------------------- reference
def reference_forward(x, p, eps=1e-5):
    """Direct (loop) NumPy implementation of RepUpsample.forward (BN in eval mode)."""
    x = np.asarray(x, np.float64)
    n, _, h, w = x.shape

    def conv_t(xx, wgt, stride, pad, opad):
        ci_, co_, kh_, kw_ = wgt.shape
        ho = (h - 1) * stride - 2 * pad + kh_ + opad
        wo = (w - 1) * stride - 2 * pad + kw_ + opad
        out = np.zeros((n, co_, ho, wo), np.float64)
        for b in range(n):
            for ci in range(ci_):
                for ih in range(h):
                    for iw in range(w):
                        for kh in range(kh_):
                            for kw in range(kw_):
                                oh = ih * stride - pad + kh
                                ow = iw * stride - pad + kw
                                if 0 <= oh < ho and 0 <= ow < wo:
                                    out[b, :, oh, ow] += xx[b, ci, ih, iw] * wgt[ci, :, kh, kw]
        return out

    def bn(y, g, beta, mu, var):
        r = lambda a: np.asarray(a, np.float64).reshape(1, -1, 1, 1)
        return r(g) * (y - r(mu)) / np.sqrt(r(var) + eps) + r(beta)

    y3 = bn(conv_t(x, np.asarray(p["w3"], np.float64), 2, 1, 1),
            p["g3"], p["be3"], p["mu3"], p["v3"])
    y1 = bn(conv_t(x, np.asarray(p["w1"], np.float64), 2, 0, 1),
            p["g1"], p["be1"], p["mu1"], p["v1"])
    ah = _interp_matrix(h, 2 * h).astype(np.float64)
    aw = _interp_matrix(w, 2 * w).astype(np.float64)
    up = np.einsum("oh,nchw,pw->ncop", ah, x, aw)
    return np.maximum(y3 + y1 + up, 0.0)


if __name__ == "__main__":
    N, C, H, W = 2, 4, 16, 16   # in_channels == out_channels (required by the residual add)
    key = jax.random.PRNGKey(0)
    kx, kp = jax.random.split(key)
    x = jax.random.normal(kx, (N, C, H, W), jnp.float32)
    params = make_params(C, kp)

    kf, bias = fuse_params(params)
    w_all, b_all = build_deconv_operator(kf, bias)
    cw, rw = build_upsample_weights(H, W)

    out = jax.block_until_ready(jax.jit(rep_upsample)(x, w_all, b_all, cw, rw))

    ref = reference_forward(np.asarray(x), {k: np.asarray(v) for k, v in params.items()})
    assert out.shape == (N, C, 2 * H, 2 * W)
    # The fused deconv matmul feeds bf16 operands to the MXU (instead of Precision.HIGHEST
    # f32 emulation, per perf guidance); tolerance reflects bf16 input rounding.
    np.testing.assert_allclose(np.asarray(out), ref, rtol=3e-2, atol=3e-2)
    print("KERNEL_OK")
</pallas_src>

<mosaic_0001>
module attributes {stable_mosaic.version = 11 : i64} {
  func.func @rep_upsample_kernel(%arg0: i32, %arg1: memref<1x16x256xbf16, #tpu.memory_space<vmem>>, %arg2: memref<1x4x290xf32, #tpu.memory_space<vmem>>, %arg3: memref<16x16xbf16, #tpu.memory_space<vmem>>, %arg4: memref<16x1xf32, #tpu.memory_space<vmem>>, %arg5: memref<4x256xf32, #tpu.memory_space<vmem>>, %arg6: memref<4x258xf32, #tpu.memory_space<vmem>>, %arg7: memref<1x2x2x4x256xf32, #tpu.memory_space<vmem>>) attributes {dimension_semantics = [#tpu.dimension_semantics<parallel>], iteration_bounds = array<i64: 2>, scalar_prefetch = 0 : i64, scratch_operands = 0 : i64, tpu.core_type = #tpu.core_type<tc>, window_params = [{transform_indices = @transform_0, window_bounds = array<i64: 1, 16, 256>}, {transform_indices = @transform_1, window_bounds = array<i64: 1, 4, 290>}, {pipeline_mode = #tpu.pipeline_mode<synchronous>, transform_indices = @transform_2, window_bounds = array<i64: 16, 16>}, {pipeline_mode = #tpu.pipeline_mode<synchronous>, transform_indices = @transform_3, window_bounds = array<i64: 16, 1>}, {pipeline_mode = #tpu.pipeline_mode<synchronous>, transform_indices = @transform_4, window_bounds = array<i64: 4, 256>}, {pipeline_mode = #tpu.pipeline_mode<synchronous>, transform_indices = @transform_5, window_bounds = array<i64: 4, 258>}, {transform_indices = @transform_6, window_bounds = array<i64: 1, 2, 2, 4, 256>}]} {
    %c0 = arith.constant 0 : index
    %c0_0 = arith.constant 0 : index
    %0 = vector.load %arg3[%c0, %c0_0] : memref<16x16xbf16, #tpu.memory_space<vmem>>, vector<16x16xbf16>
    %c0_1 = arith.constant 0 : index
    %c0_2 = arith.constant 0 : index
    %c0_3 = arith.constant 0 : index
    %1 = vector.load %arg1[%c0_1, %c0_2, %c0_3] : memref<1x16x256xbf16, #tpu.memory_space<vmem>>, vector<1x16x256xbf16>
    %2 = vector.shape_cast %1 : vector<1x16x256xbf16> to vector<16x256xbf16>
    %cst = arith.constant dense<0.000000e+00> : vector<16x256xf32>
    %3 = tpu.matmul %0, %2, %cst {dimension_numbers = #tpu.dot_dimension_numbers<[1], [0], [0], [1], [0, 0, 1, 1], [], []>} : vector<16x16xbf16>, vector<16x256xbf16>, vector<16x256xf32> -> vector<16x256xf32>
    %c0_4 = arith.constant 0 : index
    %c0_5 = arith.constant 0 : index
    %c0_6 = arith.constant 0 : index
    %4 = vector.load %arg2[%c0_4, %c0_5, %c0_6] : memref<1x4x290xf32, #tpu.memory_space<vmem>>, vector<1x4x290xf32>
    %5 = vector.shape_cast %4 : vector<1x4x290xf32> to vector<4x290xf32>
    %6 = vector.extract_strided_slice %5 {offsets = [0, 0], sizes = [4, 258], strides = [1, 1]} : vector<4x290xf32> to vector<4x258xf32>
    %7 = vector.extract_strided_slice %5 {offsets = [0, 16], sizes = [4, 258], strides = [1, 1]} : vector<4x290xf32> to vector<4x258xf32>
    %8 = vector.extract_strided_slice %5 {offsets = [0, 32], sizes = [4, 258], strides = [1, 1]} : vector<4x290xf32> to vector<4x258xf32>
    %c0_7 = arith.constant 0 : index
    %c0_8 = arith.constant 0 : index
    %9 = vector.load %arg6[%c0_7, %c0_8] : memref<4x258xf32, #tpu.memory_space<vmem>>, vector<1x258xf32>
    %10 = vector.broadcast %9 : vector<1x258xf32> to vector<4x258xf32>
    %11 = arith.mulf %10, %6 : vector<4x258xf32>
    %c1 = arith.constant 1 : index
    %c0_9 = arith.constant 0 : index
    %12 = vector.load %arg6[%c1, %c0_9] : memref<4x258xf32, #tpu.memory_space<vmem>>, vector<1x258xf32>
    %13 = vector.broadcast %12 : vector<1x258xf32> to vector<4x258xf32>
    %14 = arith.mulf %13, %7 : vector<4x258xf32>
    %15 = arith.addf %11, %14 : vector<4x258xf32>
    %c2 = arith.constant 2 : index
    %c0_10 = arith.constant 0 : index
    %16 = vector.load %arg6[%c2, %c0_10] : memref<4x258xf32, #tpu.memory_space<vmem>>, vector<1x258xf32>
    %17 = vector.broadcast %16 : vector<1x258xf32> to vector<4x258xf32>
    %18 = arith.mulf %17, %7 : vector<4x258xf32>
    %c3 = arith.constant 3 : index
    %c0_11 = arith.constant 0 : index
    %19 = vector.load %arg6[%c3, %c0_11] : memref<4x258xf32, #tpu.memory_space<vmem>>, vector<1x258xf32>
    %20 = vector.broadcast %19 : vector<1x258xf32> to vector<4x258xf32>
    %21 = arith.mulf %20, %8 : vector<4x258xf32>
    %22 = arith.addf %18, %21 : vector<4x258xf32>
    %c0_12 = arith.constant 0 : index
    %c0_13 = arith.constant 0 : index
    %23 = vector.load %arg5[%c0_12, %c0_13] : memref<4x256xf32, #tpu.memory_space<vmem>>, vector<1x256xf32>
    %c1_14 = arith.constant 1 : index
    %c0_15 = arith.constant 0 : index
    %24 = vector.load %arg5[%c1_14, %c0_15] : memref<4x256xf32, #tpu.memory_space<vmem>>, vector<1x256xf32>
    %c2_16 = arith.constant 2 : index
    %c0_17 = arith.constant 0 : index
    %25 = vector.load %arg5[%c2_16, %c0_17] : memref<4x256xf32, #tpu.memory_space<vmem>>, vector<1x256xf32>
    %c3_18 = arith.constant 3 : index
    %c0_19 = arith.constant 0 : index
    %26 = vector.load %arg5[%c3_18, %c0_19] : memref<4x256xf32, #tpu.memory_space<vmem>>, vector<1x256xf32>
    %27 = vector.extract_strided_slice %15 {offsets = [0, 0], sizes = [4, 256], strides = [1, 1]} : vector<4x258xf32> to vector<4x256xf32>
    %28 = vector.broadcast %23 : vector<1x256xf32> to vector<4x256xf32>
    %29 = arith.mulf %28, %27 : vector<4x256xf32>
    %30 = vector.extract_strided_slice %15 {offsets = [0, 1], sizes = [4, 256], strides = [1, 1]} : vector<4x258xf32> to vector<4x256xf32>
    %31 = vector.broadcast %24 : vector<1x256xf32> to vector<4x256xf32>
    %32 = arith.mulf %31, %30 : vector<4x256xf32>
    %33 = arith.addf %29, %32 : vector<4x256xf32>
    %34 = vector.extract_strided_slice %3 {offsets = [0, 0], sizes = [4, 256], strides = [1, 1]} : vector<16x256xf32> to vector<4x256xf32>
    %c0_20 = arith.constant 0 : index
    %c0_21 = arith.constant 0 : index
    %35 = vector.load %arg4[%c0_20, %c0_21] : memref<16x1xf32, #tpu.memory_space<vmem>>, vector<4x1xf32>
    %36 = vector.broadcast %35 : vector<4x1xf32> to vector<4x256xf32>
    %37 = arith.addf %34, %36 : vector<4x256xf32>
    %38 = arith.addf %37, %33 : vector<4x256xf32>
    %cst_22 = arith.constant 0.000000e+00 : f32
    %39 = vector.broadcast %cst_22 : f32 to vector<4x256xf32>
    %40 = arith.maximumf %38, %39 : vector<4x256xf32>
    %c0_23 = arith.constant 0 : index
    %c0_24 = arith.constant 0 : index
    %c0_25 = arith.constant 0 : index
    %c0_26 = arith.constant 0 : index
    %c0_27 = arith.constant 0 : index
    %41 = vector.load %arg7[%c0_23, %c0_24, %c0_25, %c0_26, %c0_27] : memref<1x2x2x4x256xf32, #tpu.memory_space<vmem>>, vector<1x1x1x4x256xf32>
    %42 = vector.shape_cast %41 : vector<1x1x1x4x256xf32> to vector<4x256xf32>
    %43 = vector.shape_cast %40 : vector<4x256xf32> to vector<1x1x1x4x256xf32>
    tpu.vector_store %arg7[%c0_23, %c0_24, %c0_25, %c0_26, %c0_27], %43 {strides = array<i32>} : memref<1x2x2x4x256xf32, #tpu.memory_space<vmem>>, vector<1x1x1x4x256xf32>,
    %44 = vector.extract_strided_slice %15 {offsets = [0, 1], sizes = [4, 256], strides = [1, 1]} : vector<4x258xf32> to vector<4x256xf32>
    %45 = vector.broadcast %25 : vector<1x256xf32> to vector<4x256xf32>
    %46 = arith.mulf %45, %44 : vector<4x256xf32>
    %47 = vector.extract_strided_slice %15 {offsets = [0, 2], sizes = [4, 256], strides = [1, 1]} : vector<4x258xf32> to vector<4x256xf32>
    %48 = vector.broadcast %26 : vector<1x256xf32> to vector<4x256xf32>
    %49 = arith.mulf %48, %47 : vector<4x256xf32>
    %50 = arith.addf %46, %49 : vector<4x256xf32>
    %51 = vector.extract_strided_slice %3 {offsets = [4, 0], sizes = [4, 256], strides = [1, 1]} : vector<16x256xf32> to vector<4x256xf32>
    %c4 = arith.constant 4 : index
    %c0_28 = arith.constant 0 : index
    %52 = vector.load %arg4[%c4, %c0_28] : memref<16x1xf32, #tpu.memory_space<vmem>>, vector<4x1xf32>
    %53 = vector.broadcast %52 : vector<4x1xf32> to vector<4x256xf32>
    %54 = arith.addf %51, %53 : vector<4x256xf32>
    %55 = arith.addf %54, %50 : vector<4x256xf32>
    %cst_29 = arith.constant 0.000000e+00 : f32
    %56 = vector.broadcast %cst_29 : f32 to vector<4x256xf32>
    %57 = arith.maximumf %55, %56 : vector<4x256xf32>
    %c0_30 = arith.constant 0 : index
    %c0_31 = arith.constant 0 : index
    %c1_32 = arith.constant 1 : index
    %c0_33 = arith.constant 0 : index
    %c0_34 = arith.constant 0 : index
    %58 = vector.load %arg7[%c0_30, %c0_31, %c1_32, %c0_33, %c0_34] : memref<1x2x2x4x256xf32, #tpu.memory_space<vmem>>, vector<1x1x1x4x256xf32>
    %59 = vector.shape_cast %58 : vector<1x1x1x4x256xf32> to vector<4x256xf32>
    %60 = vector.shape_cast %57 : vector<4x256xf32> to vector<1x1x1x4x256xf32>
    tpu.vector_store %arg7[%c0_30, %c0_31, %c1_32, %c0_33, %c0_34], %60 {strides = array<i32>} : memref<1x2x2x4x256xf32, #tpu.memory_space<vmem>>, vector<1x1x1x4x256xf32>,
    %61 = vector.extract_strided_slice %22 {offsets = [0, 0], sizes = [4, 256], strides = [1, 1]} : vector<4x258xf32> to vector<4x256xf32>
    %62 = vector.broadcast %23 : vector<1x256xf32> to vector<4x256xf32>
    %63 = arith.mulf %62, %61 : vector<4x256xf32>
    %64 = vector.extract_strided_slice %22 {offsets = [0, 1], sizes = [4, 256], strides = [1, 1]} : vector<4x258xf32> to vector<4x256xf32>
    %65 = vector.broadcast %24 : vector<1x256xf32> to vector<4x256xf32>
    %66 = arith.mulf %65, %64 : vector<4x256xf32>
    %67 = arith.addf %63, %66 : vector<4x256xf32>
    %68 = vector.extract_strided_slice %3 {offsets = [8, 0], sizes = [4, 256], strides = [1, 1]} : vector<16x256xf32> to vector<4x256xf32>
    %c8 = arith.constant 8 : index
    %c0_35 = arith.constant 0 : index
    %69 = vector.load %arg4[%c8, %c0_35] : memref<16x1xf32, #tpu.memory_space<vmem>>, vector<4x1xf32>
    %70 = vector.broadcast %69 : vector<4x1xf32> to vector<4x256xf32>
    %71 = arith.addf %68, %70 : vector<4x256xf32>
    %72 = arith.addf %71, %67 : vector<4x256xf32>
    %cst_36 = arith.constant 0.000000e+00 : f32
    %73 = vector.broadcast %cst_36 : f32 to vector<4x256xf32>
    %74 = arith.maximumf %72, %73 : vector<4x256xf32>
    %c0_37 = arith.constant 0 : index
    %c1_38 = arith.constant 1 : index
    %c0_39 = arith.constant 0 : index
    %c0_40 = arith.constant 0 : index
    %c0_41 = arith.constant 0 : index
    %75 = vector.load %arg7[%c0_37, %c1_38, %c0_39, %c0_40, %c0_41] : memref<1x2x2x4x256xf32, #tpu.memory_space<vmem>>, vector<1x1x1x4x256xf32>
    %76 = vector.shape_cast %75 : vector<1x1x1x4x256xf32> to vector<4x256xf32>
    %77 = vector.shape_cast %74 : vector<4x256xf32> to vector<1x1x1x4x256xf32>
    tpu.vector_store %arg7[%c0_37, %c1_38, %c0_39, %c0_40, %c0_41], %77 {strides = array<i32>} : memref<1x2x2x4x256xf32, #tpu.memory_space<vmem>>, vector<1x1x1x4x256xf32>,
    %78 = vector.extract_strided_slice %22 {offsets = [0, 1], sizes = [4, 256], strides = [1, 1]} : vector<4x258xf32> to vector<4x256xf32>
    %79 = vector.broadcast %25 : vector<1x256xf32> to vector<4x256xf32>
    %80 = arith.mulf %79, %78 : vector<4x256xf32>
    %81 = vector.extract_strided_slice %22 {offsets = [0, 2], sizes = [4, 256], strides = [1, 1]} : vector<4x258xf32> to vector<4x256xf32>
    %82 = vector.broadcast %26 : vector<1x256xf32> to vector<4x256xf32>
    %83 = arith.mulf %82, %81 : vector<4x256xf32>
    %84 = arith.addf %80, %83 : vector<4x256xf32>
    %85 = vector.extract_strided_slice %3 {offsets = [12, 0], sizes = [4, 256], strides = [1, 1]} : vector<16x256xf32> to vector<4x256xf32>
    %c12 = arith.constant 12 : index
    %c0_42 = arith.constant 0 : index
    %86 = vector.load %arg4[%c12, %c0_42] : memref<16x1xf32, #tpu.memory_space<vmem>>, vector<4x1xf32>
    %87 = vector.broadcast %86 : vector<4x1xf32> to vector<4x256xf32>
    %88 = arith.addf %85, %87 : vector<4x256xf32>
    %89 = arith.addf %88, %84 : vector<4x256xf32>
    %cst_43 = arith.constant 0.000000e+00 : f32
    %90 = vector.broadcast %cst_43 : f32 to vector<4x256xf32>
    %91 = arith.maximumf %89, %90 : vector<4x256xf32>
    %c0_44 = arith.constant 0 : index
    %c1_45 = arith.constant 1 : index
    %c1_46 = arith.constant 1 : index
    %c0_47 = arith.constant 0 : index
    %c0_48 = arith.constant 0 : index
    %92 = vector.load %arg7[%c0_44, %c1_45, %c1_46, %c0_47, %c0_48] : memref<1x2x2x4x256xf32, #tpu.memory_space<vmem>>, vector<1x1x1x4x256xf32>
    %93 = vector.shape_cast %92 : vector<1x1x1x4x256xf32> to vector<4x256xf32>
    %94 = vector.shape_cast %91 : vector<4x256xf32> to vector<1x1x1x4x256xf32>
    tpu.vector_store %arg7[%c0_44, %c1_45, %c1_46, %c0_47, %c0_48], %94 {strides = array<i32>} : memref<1x2x2x4x256xf32, #tpu.memory_space<vmem>>, vector<1x1x1x4x256xf32>,
    return
  }
  func.func @transform_0(%arg0: i32) -> (i32, i32, i32) {
    %c0_i32 = arith.constant 0 : i32
    %c0_i32_0 = arith.constant 0 : i32
    %c0_i32_1 = arith.constant 0 : i32
    return %arg0, %c0_i32, %c0_i32_0 : i32, i32, i32
  }
  func.func @transform_1(%arg0: i32) -> (i32, i32, i32) {
    %c0_i32 = arith.constant 0 : i32
    %c0_i32_0 = arith.constant 0 : i32
    %c0_i32_1 = arith.constant 0 : i32
    return %arg0, %c0_i32, %c0_i32_0 : i32, i32, i32
  }
  func.func @transform_2(%arg0: i32) -> (i32, i32) {
    %c0_i32 = arith.constant 0 : i32
    %c0_i32_0 = arith.constant 0 : i32
    %c0_i32_1 = arith.constant 0 : i32
    return %c0_i32, %c0_i32_0 : i32, i32
  }
  func.func @transform_3(%arg0: i32) -> (i32, i32) {
    %c0_i32 = arith.constant 0 : i32
    %c0_i32_0 = arith.constant 0 : i32
    %c0_i32_1 = arith.constant 0 : i32
    return %c0_i32, %c0_i32_0 : i32, i32
  }
  func.func @transform_4(%arg0: i32) -> (i32, i32) {
    %c0_i32 = arith.constant 0 : i32
    %c0_i32_0 = arith.constant 0 : i32
    %c0_i32_1 = arith.constant 0 : i32
    return %c0_i32, %c0_i32_0 : i32, i32
  }
  func.func @transform_5(%arg0: i32) -> (i32, i32) {
    %c0_i32 = arith.constant 0 : i32
    %c0_i32_0 = arith.constant 0 : i32
    %c0_i32_1 = arith.constant 0 : i32
    return %c0_i32, %c0_i32_0 : i32, i32
  }
  func.func @transform_6(%arg0: i32) -> (i32, i32, i32, i32, i32) {
    %c0_i32 = arith.constant 0 : i32
    %c0_i32_0 = arith.constant 0 : i32
    %c0_i32_1 = arith.constant 0 : i32
    %c0_i32_2 = arith.constant 0 : i32
    %c0_i32_3 = arith.constant 0 : i32
    return %arg0, %c0_i32, %c0_i32_0, %c0_i32_1, %c0_i32_2 : i32, i32, i32, i32, i32
  }
}

</mosaic_0001>

<llo_original>
// kernel: rep_upsample.1
$region0: #{rep_upsample.1}
  #allocation0 [shape = 'u32[]', space=smem, size = 0x4, offset = 0x4, fixed_abs, tag = 'smem constant byte address 0x4 - core index']
  #allocation1 [shape = 'u32[144,128]{1,0:T(1,128)}', space=vmem, size = 0x12000, scoped, tag = 'internal scratch']
  %s0 = inlined_call_operand.vmem [shape: bf16[2,16,256], index: 0, kind: input, shape index: {}]
  %s1 = inlined_call_operand.vmem [shape: f32[2,4,290], index: 1, kind: input, shape index: {}]
  %s2 = inlined_call_operand.vmem [shape: bf16[16,16], index: 2, kind: input, shape index: {}]
  %s3 = inlined_call_operand.vmem [shape: f32[16,1], index: 3, kind: input, shape index: {}]
  %s4 = inlined_call_operand.vmem [shape: f32[4,256], index: 4, kind: input, shape index: {}]
  %s5 = inlined_call_operand.vmem [shape: f32[4,258], index: 5, kind: input, shape index: {}]
  %s6 = inlined_call_operand.vmem [shape: f32[2,2,2,4,256], index: 6, kind: output, shape index: {}]
  %s7 = sld [smem:[#allocation0]]
  $region57: #{rep_upsample.1} parent=0
    _
  %s9 = ssub.s32 1, %s7
  %s10 = scalar_select 0, %s9, %s7
  loop: start=0, step=1, limit=4
  $region2: #{rep_upsample.1} parent=0 // loop_pre_header
    _
  $region3: #{rep_upsample.1} parent=0 // loop_header
    %s12 = sphi 0, %s16
    %p13 = scmp.ge.s32.totalorder %s12, 4
    %s22 = sphi 0, %s24
    %s25 = sphi 0, %s22
    %s26 = sphi 0, %s25
    %s42 = sphi 0, %s26
    %s48 = sphi 0, %s50
    %s51 = sphi 0, %s48
    %s52 = sphi 0, %s51
    %s68 = sphi 0, %s52
    %s72 = sphi 0, %s72
    %s74 = sphi 0, %s72
    %s75 = sphi 0, %s74
    %s89 = sphi 0, %s75
    %s93 = sphi 0, %s93
    %s95 = sphi 0, %s93
    %s96 = sphi 0, %s95
    %s110 = sphi 0, %s96
    %s114 = sphi 0, %s114
    %s116 = sphi 0, %s114
    %s117 = sphi 0, %s116
    %s131 = sphi 0, %s117
    %s135 = sphi 0, %s135
    %s137 = sphi 0, %s135
    %s138 = sphi 0, %s137
    %s152 = sphi 0, %s138
    %s158 = sphi 0, %s160
    %s161 = sphi 0, %s158
    %s162 = sphi 0, %s161
    %s178 = sphi 0, %s162
  $region4: #{rep_upsample.1} parent=0 // loop_header_branch
    %15 = sbr.rel (%p13) target = $region8
  $region5: #{rep_upsample.1} parent=0 // loop_body
    %s17 = ssub.s32 %s12, 1
    %s18 = ssub.s32 %s12, 2
    %s19 = sadd.s32 %s12, 1
    %s20 = ssub.s32 %s12, %s19
    %p21 = scmp.eq.s32.totalorder %s20, 0
    %s23 = sadd.s32 %s22, 1
    %s24 = scalar_select %p21, %s22, %s23
    %p27 = pneg %p21
    %p28 = scmp.eq.s32.totalorder %s12, 1
    %p29 = por %p27, %p28
    %p30 = scmp.ne.s32.totalorder %s22, %s25
    %p31 = scmp.eq.s32.totalorder %s12, 0
    %p32 = por %p30, %p31
    %p33 = scmp.ne.s32.totalorder %s22, %s25
    %p34 = scmp.eq.s32.totalorder %s17, 1
    %p35 = por %p33, %p34
    %p36 = scmp.ne.s32.totalorder %s25, %s26
    %p37 = scmp.eq.s32.totalorder %s17, 0
    %p38 = por %p36, %p37
    %p39 = scmp.ne.s32.totalorder %s25, %s26
    %p40 = scmp.eq.s32.totalorder %s18, 1
    %p41 = por %p39, %p40
    %p43 = scmp.ne.s32.totalorder %s26, %s42
    %p44 = scmp.eq.s32.totalorder %s18, 0
    %p45 = por %p43, %p44
    %s46 = ssub.s32 %s12, %s19
    %p47 = scmp.eq.s32.totalorder %s46, 0
    %s49 = sadd.s32 %s48, 1
    %s50 = scalar_select %p47, %s48, %s49
    %p53 = pneg %p47
    %p54 = scmp.eq.s32.totalorder %s12, 1
    %p55 = por %p53, %p54
    %p56 = scmp.ne.s32.totalorder %s48, %s51
    %p57 = scmp.eq.s32.totalorder %s12, 0
    %p58 = por %p56, %p57
    %p59 = scmp.ne.s32.totalorder %s48, %s51
    %p60 = scmp.eq.s32.totalorder %s17, 1
    %p61 = por %p59, %p60
    %p62 = scmp.ne.s32.totalorder %s51, %s52
    %p63 = scmp.eq.s32.totalorder %s17, 0
    %p64 = por %p62, %p63
    %p65 = scmp.ne.s32.totalorder %s51, %s52
    %p66 = scmp.eq.s32.totalorder %s18, 1
    %p67 = por %p65, %p66
    %p69 = scmp.ne.s32.totalorder %s52, %s68
    %p70 = scmp.eq.s32.totalorder %s18, 0
    %p71 = por %p69, %p70
    %s73 = sadd.s32 %s72, 1
    %p76 = scmp.eq.s32.totalorder %s12, 1
    %p77 = scmp.ne.s32.totalorder %s72, %s74
    %p78 = scmp.eq.s32.totalorder %s12, 0
    %p79 = por %p77, %p78
    %p80 = scmp.ne.s32.totalorder %s72, %s74
    %p81 = scmp.eq.s32.totalorder %s17, 1
    %p82 = por %p80, %p81
    %p83 = scmp.ne.s32.totalorder %s74, %s75
    %p84 = scmp.eq.s32.totalorder %s17, 0
    %p85 = por %p83, %p84
    %p86 = scmp.ne.s32.totalorder %s74, %s75
    %p87 = scmp.eq.s32.totalorder %s18, 1
    %p88 = por %p86, %p87
    %p90 = scmp.ne.s32.totalorder %s75, %s89
    %p91 = scmp.eq.s32.totalorder %s18, 0
    %p92 = por %p90, %p91
    %s94 = sadd.s32 %s93, 1
    %p97 = scmp.eq.s32.totalorder %s12, 1
    %p98 = scmp.ne.s32.totalorder %s93, %s95
    %p99 = scmp.eq.s32.totalorder %s12, 0
    %p100 = por %p98, %p99
    %p101 = scmp.ne.s32.totalorder %s93, %s95
    %p102 = scmp.eq.s32.totalorder %s17, 1
    %p103 = por %p101, %p102
    %p104 = scmp.ne.s32.totalorder %s95, %s96
    %p105 = scmp.eq.s32.totalorder %s17, 0
    %p106 = por %p104, %p105
    %p107 = scmp.ne.s32.totalorder %s95, %s96
    %p108 = scmp.eq.s32.totalorder %s18, 1
    %p109 = por %p107, %p108
    %p111 = scmp.ne.s32.totalorder %s96, %s110
    %p112 = scmp.eq.s32.totalorder %s18, 0
    %p113 = por %p111, %p112
    %s115 = sadd.s32 %s114, 1
    %p118 = scmp.eq.s32.totalorder %s12, 1
    %p119 = scmp.ne.s32.totalorder %s114, %s116
    %p120 = scmp.eq.s32.totalorder %s12, 0
    %p121 = por %p119, %p120
    %p122 = scmp.ne.s32.totalorder %s114, %s116
    %p123 = scmp.eq.s32.totalorder %s17, 1
    %p124 = por %p122, %p123
    %p125 = scmp.ne.s32.totalorder %s116, %s117
    %p126 = scmp.eq.s32.totalorder %s17, 0
    %p127 = por %p125, %p126
    %p128 = scmp.ne.s32.totalorder %s116, %s117
    %p129 = scmp.eq.s32.totalorder %s18, 1
    %p130 = por %p128, %p129
    %p132 = scmp.ne.s32.totalorder %s117, %s131
    %p133 = scmp.eq.s32.totalorder %s18, 0
    %p134 = por %p132, %p133
    %s136 = sadd.s32 %s135, 1
    %p139 = scmp.eq.s32.totalorder %s12, 1
    %p140 = scmp.ne.s32.totalorder %s135, %s137
    %p141 = scmp.eq.s32.totalorder %s12, 0
    %p142 = por %p140, %p141
    %p143 = scmp.ne.s32.totalorder %s135, %s137
    %p144 = scmp.eq.s32.totalorder %s17, 1
    %p145 = por %p143, %p144
    %p146 = scmp.ne.s32.totalorder %s137, %s138
    %p147 = scmp.eq.s32.totalorder %s17, 0
    %p148 = por %p146, %p147
    %p149 = scmp.ne.s32.totalorder %s137, %s138
    %p150 = scmp.eq.s32.totalorder %s18, 1
    %p151 = por %p149, %p150
    %p153 = scmp.ne.s32.totalorder %s138, %s152
    %p154 = scmp.eq.s32.totalorder %s18, 0
    %p155 = por %p153, %p154
    %s156 = ssub.s32 %s12, %s19
    %p157 = scmp.eq.s32.totalorder %s156, 0
    %s159 = sadd.s32 %s158, 1
    %s160 = scalar_select %p157, %s158, %s159
    %p163 = pneg %p157
    %p164 = scmp.eq.s32.totalorder %s12, 1
    %p165 = por %p163, %p164
    %p166 = scmp.ne.s32.totalorder %s158, %s161
    %p167 = scmp.eq.s32.totalorder %s12, 0
    %p168 = por %p166, %p167
    %p169 = scmp.ne.s32.totalorder %s158, %s161
    %p170 = scmp.eq.s32.totalorder %s17, 1
    %p171 = por %p169, %p170
    %p172 = scmp.ne.s32.totalorder %s161, %s162
    %p173 = scmp.eq.s32.totalorder %s17, 0
    %p174 = por %p172, %p173
    %p175 = scmp.ne.s32.totalorder %s161, %s162
    %p176 = scmp.eq.s32.totalorder %s18, 1
    %p177 = por %p175, %p176
    %p179 = scmp.ne.s32.totalorder %s162, %s178
    %p180 = scmp.eq.s32.totalorder %s18, 0
    %p181 = por %p179, %p180
    %p182 = scmp.le.s32.totalorder 1, %s12
    %p183 = scmp.lt.s32.totalorder %s12, 3
    %p184 = pnand %p182, %p183
    %p185 = pneg %p184
    // Predicated region
    $region9: #{rep_upsample.1} parent=5 // pred_check
      _
    $region10: #{rep_upsample.1} parent=5 // pred_check_branch
      %187 = sbr.rel (%p184) target = $region12
    $region11: #{rep_upsample.1} parent=5 // pred_region
      %s188 = ssub.s32 %s12, 1
      // Predicated region
      $region13: #{rep_upsample.1} parent=11 // pred_check
        %p189 = pneg %p85
      $region14: #{rep_upsample.1} parent=11 // pred_check_branch
        %191 = sbr.rel (%p189) target = $region16
      $region15: #{rep_upsample.1} parent=11 // pred_region
        _
      $region16: #{rep_upsample.1} parent=11 // pred_fallthru
        _
      // Predicated region
      $region17: #{rep_upsample.1} parent=11 // pred_check
        %p192 = pneg %p106
      $region18: #{rep_upsample.1} parent=11 // pred_check_branch
        %194 = sbr.rel (%p192) target = $region20
      $region19: #{rep_upsample.1} parent=11 // pred_region
        _
      $region20: #{rep_upsample.1} parent=11 // pred_fallthru
        _
      // Predicated region
      $region21: #{rep_upsample.1} parent=11 // pred_check
        %p195 = pneg %p127
      $region22: #{rep_upsample.1} parent=11 // pred_check_branch
        %197 = sbr.rel (%p195) target = $region24
      $region23: #{rep_upsample.1} parent=11 // pred_region
        _
      $region24: #{rep_upsample.1} parent=11 // pred_fallthru
        _
      // Predicated region
      $region25: #{rep_upsample.1} parent=11 // pred_check
        %p198 = pneg %p148
      $region26: #{rep_upsample.1} parent=11 // pred_check_branch
        %200 = sbr.rel (%p198) target = $region28
      $region27: #{rep_upsample.1} parent=11 // pred_region
        _
      $region28: #{rep_upsample.1} parent=11 // pred_fallthru
        _
    $region12: #{rep_upsample.1} parent=5 // pred_fallthru
      _
    %p201 = scmp.lt.s32.totalorder %s12, 2
    // Predicated region
    $region29: #{rep_upsample.1} parent=5 // pred_check
      %p202 = pneg %p201
    $region30: #{rep_upsample.1} parent=5 // pred_check_branch
      %204 = sbr.rel (%p202) target = $region32
    $region31: #{rep_upsample.1} parent=5 // pred_region
      // Predicated region
      $region33: #{rep_upsample.1} parent=31 // pred_check
        %p205 = pneg %p32
      $region34: #{rep_upsample.1} parent=31 // pred_check_branch
        %207 = sbr.rel (%p205) target = $region36
      $region35: #{rep_upsample.1} parent=31 // pred_region
        %p208 = scmp.lt.s32.totalorder %s12, 1
        %s209 = scalar_select %p208, %s12, 1
        %s210 = smul.addr %s209, 4
        %s211 = smul.addr %s210, 4
        %s212 = scalar_lea.vmem %s0, %s211
      $region36: #{rep_upsample.1} parent=31 // pred_fallthru
        _
      // Predicated region
      $region37: #{rep_upsample.1} parent=31 // pred_check
        %p213 = pneg %p58
      $region38: #{rep_upsample.1} parent=31 // pred_check_branch
        %215 = sbr.rel (%p213) target = $region40
      $region39: #{rep_upsample.1} parent=31 // pred_region
        %p216 = scmp.lt.s32.totalorder %s12, 1
        %s217 = scalar_select %p216, %s12, 1
        %s218 = smul.addr %s217, 3
        %s219 = smul.addr %s218, 4
        %s220 = scalar_lea.vmem %s1, %s219
      $region40: #{rep_upsample.1} parent=31 // pred_fallthru
        _
    $region32: #{rep_upsample.1} parent=5 // pred_fallthru
      _
    %p221 = scmp.le.s32.totalorder 1, %s12
    %p222 = scmp.lt.s32.totalorder %s12, 3
    %p223 = pnand %p221, %p222
    %p224 = pneg %p223
    // Predicated region
    $region41: #{rep_upsample.1} parent=5 // pred_check
      _
    $region42: #{rep_upsample.1} parent=5 // pred_check_branch
      %226 = sbr.rel (%p223) target = $region44
    $region43: #{rep_upsample.1} parent=5 // pred_region
      %s227 = ssub.s32 %s12, 1
      %p228 = scmp.lt.s32.totalorder %s17, 1
      %s229 = scalar_select %p228, %s17, 1
      %s230 = smul.addr %s229, 4
      %s231 = smul.addr %s230, 4
      %s232 = scalar_lea.vmem %s0, %s231
      %p233 = pneg %p38
      %p234 = pneg %p35
      %p235 = scmp.lt.s32.totalorder %s17, 1
      %s236 = scalar_select %p235, %s17, 1
      %s237 = smul.addr %s236, 3
      %s238 = smul.addr %s237, 4
      %s239 = scalar_lea.vmem %s1, %s238
      %p240 = pneg %p64
      %p241 = pneg %p61
      %p242 = pneg %p85
      %p243 = pneg %p82
      %p244 = pneg %p106
      %p245 = pneg %p103
      %p246 = pneg %p127
      %p247 = pneg %p124
      %p248 = pneg %p148
      %p249 = pneg %p145
      %p250 = pneg %p174
      %p251 = pneg %p171
      %p252 = scmp.lt.s32.totalorder %s17, 1
      %s253 = scalar_select %p252, %s17, 1
      %s254 = smul.addr %s253, 8
      %s255 = smul.addr %s254, 4
      %s256 = scalar_lea.vmem %s6, %s255
      %p257 = scmp.lt.s32.totalorder %s17, 1
      %s258 = scalar_select %p257, %s17, 1
      %s259 = smul.addr %s258, 4
      %s260 = smul.addr %s259, 4
      %s261 = scalar_lea.vmem %s0, %s260
      %p262 = scmp.lt.s32.totalorder %s17, 1
      %s263 = scalar_select %p262, %s17, 1
      %s264 = smul.addr %s263, 3
      %s265 = smul.addr %s264, 4
      %s266 = scalar_lea.vmem %s1, %s265
      %p267 = scmp.lt.s32.totalorder %s17, 1
      %s268 = scalar_select %p267, %s17, 1
      %s269 = smul.addr %s268, 8
      %s270 = smul.addr %s269, 4
      %s271 = scalar_lea.vmem %s6, %s270
      %v273 = vld [vmem:[%s2] sm:$0xf]
      %v274 = vld [vmem:[%s2 + $0x4] sm:$0xf]
      %v275 = vld [vmem:[%s261] sm:$0xff]
      %v276 = vld [vmem:[%s261 + $0x8] sm:$0xff]
      %v279 = vunpack.c.l.b16 %v273
      %v280 = vunpack.c.l.b16 %v274
      %v281 = vpack.c.b16 %v280, %v279
      %v284 = vunpack.c.l.b16 %v275
      %v285 = vunpack.c.h.b16 %v275
      %v286 = vunpack.c.l.b16 %v276
      %v287 = vunpack.c.h.b16 %v276
      %v288 = vpack.c.b16 %v286, %v284
      %v289 = vpack.c.b16 %v287, %v285
      %vm292 = vcmask 130048
      %v294 = vsel %vm292, %v281, 0
      %296 = vmatprep.subr.bf16.mxu0 %v289
      %297 = vmatpush1.bf16.msra.mxu0 %v288
      %298 = vmatprep.subr.bf16.mxu0 0
      %299 = vmatpush1.bf16.msra.mxu0 0
      %300 = vmatprep.subr.bf16.mxu0 0
      %301 = vmatpush1.bf16.msra.mxu0 0
      %302 = vmatprep.subr.bf16.mxu0 0
      %303 = vmatpush1.bf16.msra.mxu0 0
      %304 = vmatprep.subr.bf16.mxu0 0
      %305 = vmatpush1.bf16.msra.mxu0 0
      %306 = vmatprep.subr.bf16.mxu0 0
      %307 = vmatpush1.bf16.msra.mxu0 0
      %308 = vmatprep.subr.bf16.mxu0 0
      %309 = vmatpush1.bf16.msra.mxu0 0
      %310 = vmatprep.subr.bf16.mxu0 0
      %311 = vmatpush1.bf16.msra.mxu0 0
      %312 = vmatprep.subr.bf16.mxu0 0
      %313 = vmatpush1.bf16.msra.mxu0 0
      %314 = vmatprep.subr.bf16.mxu0 0
      %315 = vmatpush1.bf16.msra.mxu0 0
      %316 = vmatprep.subr.bf16.mxu0 0
      %317 = vmatpush1.bf16.msra.mxu0 0
      %318 = vmatprep.subr.bf16.mxu0 0
      %319 = vmatpush1.bf16.msra.mxu0 0
      %320 = vmatprep.subr.bf16.mxu0 0
      %321 = vmatpush1.bf16.msra.mxu0 0
      %322 = vmatprep.subr.bf16.mxu0 0
      %323 = vmatpush1.bf16.msra.mxu0 0
      %324 = vmatprep.subr.bf16.mxu0 0
      %325 = vmatpush1.bf16.msra.mxu0 0
      %326 = vmatprep.subr.bf16.mxu0 0
      %327 = vmatpush1.bf16.msra.mxu0 0
      %328 = vmatprep.mubr.bf16.mxu0 0
      %329 = vmatmul.mubr.bf16.gmra.mrb[0].mxu0 %v294
      %v330 = vpop.f32.mrb[0].mxu0
      %v331 = vadd.f32 0.0, %v330
      %v332 = vpop.f32.mrb[0].mxu0
      %v333 = vadd.f32 0.0, %v332
      %v334 = vpop.f32.mrb[0].mxu0
      %v335 = vadd.f32 0.0, %v334
      %v336 = vpop.f32.mrb[0].mxu0
      %v337 = vadd.f32 0.0, %v336
      %338 = vdwg.mxu0
      %v339 = vld [vmem:[%s266] sm:$0xff]
      %v340 = vld [vmem:[%s266 + $0x8] sm:$0xf]
      %v341 = vld [vmem:[%s5] ss:$4 sm:$0x7]
      %v343 = vlaneseq
      %v344 = vshrl.u32 %v343, 7
      %v345 = vsub.s32 0, %v344
      %v346 = vrot.slane %v341, %v345
      %v347 = vlaneseq
      %v348 = vshrl.u32 %v347, 7
      %v349 = vsub.s32 1, %v348
      %v350 = vrot.slane %v341, %v349
      %v351 = vlaneseq
      %v352 = vshrl.u32 %v351, 7
      %v353 = vsub.s32 2, %v352
      %v354 = vrot.slane %v341, %v353
      %v360 = vcombine.high %v339, %v339
      %v362 = vmul.f32 %v346, %v339
      %v363 = vmul.f32 %v350, %v360
      %v364 = vmul.f32 %v354, %v340
      %s365 = scalar_lea.vmem %s5, 1
      %v366 = vld [vmem:[%s365] ss:$4 sm:$0x7]
      %v368 = vlaneseq
      %v369 = vshrl.u32 %v368, 7
      %v370 = vsub.s32 0, %v369
      %v371 = vrot.slane %v366, %v370
      %v372 = vlaneseq
      %v373 = vshrl.u32 %v372, 7
      %v374 = vsub.s32 1, %v373
      %v375 = vrot.slane %v366, %v374
      %v376 = vlaneseq
      %v377 = vshrl.u32 %v376, 7
      %v378 = vsub.s32 2, %v377
      %v379 = vrot.slane %v366, %v378
      %383 = vrot.lane.b32.xlu0 %v339, 112
      %v384 = vpop.permute.xlu0 %383
      %385 = vrot.lane.b32.xlu0 %v360, 112
      %v386 = vpop.permute.xlu0 %385
      %387 = vrot.lane.b32.xlu0 %v340, 112
      %v388 = vpop.permute.xlu0 %387
      %vm389 = vcmask 916480
      %v390 = vsel %vm389, %v384, %v386
      %v391 = vsel %vm389, %v386, %v388
      %v395 = vmul.f32 %v371, %v390
      %v396 = vmul.f32 %v375, %v391
      %v397 = vmul.f32 %v379, %v388
      %v398 = vadd.f32 %v362, %v395
      %v399 = vadd.f32 %v363, %v396
      %v400 = vadd.f32 %v364, %v397
      %s401 = scalar_lea.vmem %s5, 2
      %v402 = vld [vmem:[%s401] ss:$4 sm:$0x7]
      %v404 = vlaneseq
      %v405 = vshrl.u32 %v404, 7
      %v406 = vsub.s32 0, %v405
      %v407 = vrot.slane %v402, %v406
      %v408 = vlaneseq
      %v409 = vshrl.u32 %v408, 7
      %v410 = vsub.s32 1, %v409
      %v411 = vrot.slane %v402, %v410
      %v412 = vlaneseq
      %v413 = vshrl.u32 %v412, 7
      %v414 = vsub.s32 2, %v413
      %v415 = vrot.slane %v402, %v414
      %v419 = vmul.f32 %v407, %v390
      %v420 = vmul.f32 %v411, %v391
      %v421 = vmul.f32 %v415, %v388
      %s422 = scalar_lea.vmem %s5, 3
      %v423 = vld [vmem:[%s422] ss:$4 sm:$0x7]
      %v425 = vlaneseq
      %v426 = vshrl.u32 %v425, 7
      %v427 = vsub.s32 0, %v426
      %v428 = vrot.slane %v423, %v427
      %v429 = vlaneseq
      %v430 = vshrl.u32 %v429, 7
      %v431 = vsub.s32 1, %v430
      %v432 = vrot.slane %v423, %v431
      %v433 = vlaneseq
      %v434 = vshrl.u32 %v433, 7
      %v435 = vsub.s32 2, %v434
      %v436 = vrot.slane %v423, %v435
      %440 = vrot.lane.b32.xlu0 %v339, 96
      %v441 = vpop.permute.xlu0 %440
      %442 = vrot.lane.b32.xlu0 %v360, 96
      %v443 = vpop.permute.xlu0 %442
      %444 = vrot.lane.b32.xlu0 %v340, 96
      %v445 = vpop.permute.xlu0 %444
      %vm446 = vcmask 785408
      %v447 = vsel %vm446, %v441, %v443
      %v448 = vsel %vm446, %v443, %v445
      %v452 = vmul.f32 %v428, %v447
      %v453 = vmul.f32 %v432, %v448
      %v454 = vmul.f32 %v436, %v445
      %v455 = vadd.f32 %v419, %v452
      %v456 = vadd.f32 %v420, %v453
      %v457 = vadd.f32 %v421, %v454
      %v458 = vld [vmem:[%s4] ss:$4 sm:$0x3]
      %s459 = scalar_lea.vmem %s4, 1
      %v460 = vld [vmem:[%s459] ss:$4 sm:$0x3]
      %s461 = scalar_lea.vmem %s4, 2
      %v462 = vld [vmem:[%s461] ss:$4 sm:$0x3]
      %s463 = scalar_lea.vmem %s4, 3
      %v464 = vld [vmem:[%s463] ss:$4 sm:$0x3]
      %v466 = vlaneseq
      %v467 = vshrl.u32 %v466, 7
      %v468 = vsub.s32 0, %v467
      %v469 = vrot.slane %v458, %v468
      %v470 = vlaneseq
      %v471 = vshrl.u32 %v470, 7
      %v472 = vsub.s32 1, %v471
      %v473 = vrot.slane %v458, %v472
      %v476 = vmul.f32 %v469, %v398
      %v477 = vmul.f32 %v473, %v399
      %v479 = vlaneseq
      %v480 = vshrl.u32 %v479, 7
      %v481 = vsub.s32 0, %v480
      %v482 = vrot.slane %v460, %v481
      %v483 = vlaneseq
      %v484 = vshrl.u32 %v483, 7
      %v485 = vsub.s32 1, %v484
      %v486 = vrot.slane %v460, %v485
      %492 = vrot.lane.b32.xlu0 %v398, 127
      %v493 = vpop.permute.xlu0 %492
      %494 = vrot.lane.b32.xlu0 %v399, 127
      %v495 = vpop.permute.xlu0 %494
      %496 = vrot.lane.b32.xlu0 %v400, 127
      %v497 = vpop.permute.xlu0 %496
      %vm498 = vcmask 1039360
      %v499 = vsel %vm498, %v493, %v495
      %v500 = vsel %vm498, %v495, %v497
      %v503 = vmul.f32 %v482, %v499
      %v504 = vmul.f32 %v486, %v500
      %v505 = vadd.f32 %v476, %v503
      %v506 = vadd.f32 %v477, %v504
      %v507 = vld [vmem:[%s3] sm:$0xf]
      %509 = vset.pattern.permute.xlu0 0
      %510 = vperm.xlu0 %509, %v507
      %v511 = vpop.permute.xlu0 %510
      %v513 = vadd.f32 %v331, %v511
      %v514 = vadd.f32 %v333, %v511
      %v515 = vadd.f32 %v513, %v505
      %v516 = vadd.f32 %v514, %v506
      %v517 = vmax.f32 %v515, 0.0
      %v518 = vmax.f32 %v516, 0.0
      %v521 = vcombine.low %v517, %v518
      %523 = vst [vmem:[%s271] sm:$0xff] %v521
      %v525 = vlaneseq
      %v526 = vshrl.u32 %v525, 7
      %v527 = vsub.s32 0, %v526
      %v528 = vrot.slane %v462, %v527
      %v529 = vlaneseq
      %v530 = vshrl.u32 %v529, 7
      %v531 = vsub.s32 1, %v530
      %v532 = vrot.slane %v462, %v531
      %v535 = vmul.f32 %v528, %v499
      %v536 = vmul.f32 %v532, %v500
      %v538 = vlaneseq
      %v539 = vshrl.u32 %v538, 7
      %v540 = vsub.s32 0, %v539
      %v541 = vrot.slane %v464, %v540
      %v542 = vlaneseq
      %v543 = vshrl.u32 %v542, 7
      %v544 = vsub.s32 1, %v543
      %v545 = vrot.slane %v464, %v544
      %548 = vrot.lane.b32.xlu0 %v398, 126
      %v549 = vpop.permute.xlu0 %548
      %550 = vrot.lane.b32.xlu0 %v399, 126
      %v551 = vpop.permute.xlu0 %550
      %552 = vrot.lane.b32.xlu0 %v400, 126
      %v553 = vpop.permute.xlu0 %552
      %vm554 = vcmask 1031168
      %v555 = vsel %vm554, %v549, %v551
      %v556 = vsel %vm554, %v551, %v553
      %v559 = vmul.f32 %v541, %v555
      %v560 = vmul.f32 %v545, %v556
      %v561 = vadd.f32 %v535, %v559
      %v562 = vadd.f32 %v536, %v560
      %v563 = vld [vmem:[%s3 + $0x4] sm:$0xf]
      %565 = vset.pattern.permute.xlu0 0
      %566 = vperm.xlu0 %565, %v563
      %v567 = vpop.permute.xlu0 %566
      %v568 = vrot.slane %v567, 4
      %v570 = vadd.f32 %v331, %v568
      %v571 = vadd.f32 %v333, %v568
      %v574 = vrot.slane %v561, 4
      %v575 = vrot.slane %v562, 4
      %v578 = vadd.f32 %v570, %v574
      %v579 = vadd.f32 %v571, %v575
      %v580 = vmax.f32 %v578, 0.0
      %v581 = vmax.f32 %v579, 0.0
      %v584 = vcombine.high %v580, %v581
      %s586 = scalar_lea.vmem %s271, 8
      %587 = vst [vmem:[%s586] sm:$0xff] %v584
      %v588 = vmul.f32 %v469, %v455
      %v589 = vmul.f32 %v473, %v456
      %593 = vrot.lane.b32.xlu0 %v455, 127
      %v594 = vpop.permute.xlu0 %593
      %595 = vrot.lane.b32.xlu0 %v456, 127
      %v596 = vpop.permute.xlu0 %595
      %597 = vrot.lane.b32.xlu0 %v457, 127
      %v598 = vpop.permute.xlu0 %597
      %v599 = vsel %vm498, %v594, %v596
      %v600 = vsel %vm498, %v596, %v598
      %v603 = vmul.f32 %v482, %v599
      %v604 = vmul.f32 %v486, %v600
      %v605 = vadd.f32 %v588, %v603
      %v606 = vadd.f32 %v589, %v604
      %v607 = vld [vmem:[%s3 + $0x8] sm:$0xf]
      %609 = vset.pattern.permute.xlu0 0
      %610 = vperm.xlu0 %609, %v607
      %v611 = vpop.permute.xlu0 %610
      %v613 = vadd.f32 %v335, %v611
      %v614 = vadd.f32 %v337, %v611
      %v615 = vadd.f32 %v613, %v605
      %v616 = vadd.f32 %v614, %v606
      %v617 = vmax.f32 %v615, 0.0
      %v618 = vmax.f32 %v616, 0.0
      %v621 = vcombine.low %v617, %v618
      %s623 = scalar_lea.vmem %s271, 16
      %624 = vst [vmem:[%s623] sm:$0xff] %v621
      %v625 = vmul.f32 %v528, %v599
      %v626 = vmul.f32 %v532, %v600
      %627 = vrot.lane.b32.xlu0 %v455, 126
      %v628 = vpop.permute.xlu0 %627
      %629 = vrot.lane.b32.xlu0 %v456, 126
      %v630 = vpop.permute.xlu0 %629
      %631 = vrot.lane.b32.xlu0 %v457, 126
      %v632 = vpop.permute.xlu0 %631
      %v633 = vsel %vm554, %v628, %v630
      %v634 = vsel %vm554, %v630, %v632
      %v637 = vmul.f32 %v541, %v633
      %v638 = vmul.f32 %v545, %v634
      %v639 = vadd.f32 %v625, %v637
      %v640 = vadd.f32 %v626, %v638
      %v641 = vld [vmem:[%s3 + $0xc] sm:$0xf]
      %643 = vset.pattern.permute.xlu0 0
      %644 = vperm.xlu0 %643, %v641
      %v645 = vpop.permute.xlu0 %644
      %v646 = vrot.slane %v645, 4
      %v648 = vadd.f32 %v335, %v646
      %v649 = vadd.f32 %v337, %v646
      %v652 = vrot.slane %v639, 4
      %v653 = vrot.slane %v640, 4
      %v656 = vadd.f32 %v648, %v652
      %v657 = vadd.f32 %v649, %v653
      %v658 = vmax.f32 %v656, 0.0
      %v659 = vmax.f32 %v657, 0.0
      %v662 = vcombine.high %v658, %v659
      %s664 = scalar_lea.vmem %s271, 24
      %665 = vst [vmem:[%s664] sm:$0xff] %v662
      %p666 = scmp.lt.s32.totalorder %s17, 1
      %s667 = scalar_select %p666, %s17, 1
      %s668 = smul.addr %s667, 8
      %s669 = smul.addr %s668, 4
      %s670 = scalar_lea.vmem %s6, %s669
      // Predicated region
      $region45: #{rep_upsample.1} parent=43 // pred_check
        %p671 = pneg %p171
      $region46: #{rep_upsample.1} parent=43 // pred_check_branch
        %673 = sbr.rel (%p671) target = $region48
      $region47: #{rep_upsample.1} parent=43 // pred_region
        _
      $region48: #{rep_upsample.1} parent=43 // pred_fallthru
        _
    $region44: #{rep_upsample.1} parent=5 // pred_fallthru
      _
    %p674 = scmp.le.s32.totalorder 2, %s12
    // Predicated region
    $region49: #{rep_upsample.1} parent=5 // pred_check
      %p675 = pneg %p674
    $region50: #{rep_upsample.1} parent=5 // pred_check_branch
      %677 = sbr.rel (%p675) target = $region52
    $region51: #{rep_upsample.1} parent=5 // pred_region
      %s678 = ssub.s32 %s12, 2
      // Predicated region
      $region53: #{rep_upsample.1} parent=51 // pred_check
        %p679 = pneg %p177
      $region54: #{rep_upsample.1} parent=51 // pred_check_branch
        %681 = sbr.rel (%p679) target = $region56
      $region55: #{rep_upsample.1} parent=51 // pred_region
        %p682 = scmp.lt.s32.totalorder %s18, 1
        %s683 = scalar_select %p682, %s18, 1
        %s684 = smul.addr %s683, 8
        %s685 = smul.addr %s684, 4
        %s686 = scalar_lea.vmem %s6, %s685
      $region56: #{rep_upsample.1} parent=51 // pred_fallthru
        _
    $region52: #{rep_upsample.1} parent=5 // pred_fallthru
      _
  $region6: #{rep_upsample.1} parent=0 // loop_footer
    %s16 = sadd.s32 1, %s12
  $region7: #{rep_upsample.1} parent=0 // loop_footer_branch
    %11 = sbr.rel target = $region3
  $region8: #{rep_upsample.1} parent=0 // loop_exit
    _

</llo_original>
